<compile_context>
chip_gen: v6e
topology: v6e:2x2x1
jax: 0.10.0
libtpu: 0.0.40
codegen_flags: <defaults>
</compile_context>

<pallas_src>
import functools
import math

import jax
import jax.numpy as jnp
from jax.experimental import pallas as pl
from jax.experimental.pallas import tpu as pltpu

EPS = 1e-8
LRELU_SLOPE = 0.2


def _round_up(x, m):
    return (x + m - 1) // m * m


def _vmem_limit_bytes():
    # Generation-aware VMEM budget: ~85% of physical capacity (v7x: 64 MiB ->
    # ~54 MiB; v5e/v6e: 128 MiB -> ~109 MiB), leaving compiler-scratch headroom.
    cap = 64 * 1024 * 1024
    try:
        cap = int(pltpu.get_tpu_info().vmem_capacity_bytes)
    except Exception:
        pass
    return int(cap * 0.85)


def _style_block_kernel(wmod_ref, bias_ref, scale_ref, xa_ref, xb_ref,
                        noise_ref, out_ref, *, tap_offsets, taps_per_matmul,
                        tile_q, c_in):
    """One (batch, spatial-tile) grid step of the modulated 3x3 conv."""
    # Two consecutive lane-dense chunks of the flattened padded input; every
    # 3x3 tap window [off, off + tile_q) lies inside their concatenation
    # (guaranteed by tile_q >= 2*W + 6).
    xab = jnp.concatenate([xa_ref[0], xb_ref[0]], axis=-1)   # (C_in, 2*tile_q) bf16
    wmod = wmod_ref[0]                                        # (C_out, 9*C_in) bf16

    # Grouped tap matmuls (taps_per_matmul in {1, 3, 9}); f32 accumulation.
    acc = None
    n_groups = 9 // taps_per_matmul
    for g in range(n_groups):
        offs = tap_offsets[g * taps_per_matmul:(g + 1) * taps_per_matmul]
        if taps_per_matmul == 1:
            sub = xab[:, offs[0]:offs[0] + tile_q]                       # (C_in, tile_q)
        else:
            sub = jnp.concatenate(
                [xab[:, off:off + tile_q] for off in offs], axis=0)      # (tpm*C_in, tile_q)
        w_g = wmod[:, g * taps_per_matmul * c_in:(g + 1) * taps_per_matmul * c_in]
        part = jnp.dot(w_g, sub, preferred_element_type=jnp.float32)     # (C_out, tile_q)
        acc = part if acc is None else acc + part

    # ---- noise, bias, LeakyReLU(0.2): f32 epilogue --------------------------
    y = acc + scale_ref[0] * noise_ref[0]     # (1, tile_q) broadcast
    y = y + bias_ref[...]                     # (C_out, 1) broadcast
    out_ref[0] = jnp.where(y >= 0.0, y, LRELU_SLOPE * y).astype(out_ref.dtype)


def style_block_pallas(x, w_lat, noise, params, *, tile_q=1024,
                       taps_per_matmul=3, out_dtype=jnp.float32):
    """x: (B, C_in, H, W) NCHW; w_lat: (B, D); noise: (B, 1, H, W).

    taps_per_matmul: 1 (v7x, MRB in-place accumulate), 3 (v6e compromise,
    default), 9 (fully fused single matmul, v5e MXU-bound).
    """
    wstyle_raw, bstyle, conv_w_raw, scale_noise, bias = params
    B, C_in, H, W = x.shape
    D = w_lat.shape[1]
    C_out = conv_w_raw.shape[0]
    assert taps_per_matmul in (1, 3, 9)

    # Conv is computed in the padded-output domain q = h*(W+2) + w; the two
    # junk columns per row (and the tail) are sliced off after the kernel.
    Hp, Wp = H + 2, W + 2
    Q = H * Wp
    # every tap window [off, off+tile_q) must fit inside two consecutive chunks
    tile_q = _round_up(max(tile_q, 2 * W + 6), 128)           # lane-dense tiles
    Q_pad = _round_up(Q, tile_q)
    n_tiles = Q_pad // tile_q
    n_chunks = n_tiles + 1
    L = n_chunks * tile_q

    # ---- style linear + modulation/demodulation (hoisted, tiny batched op) --
    c_style = 1.0 / math.sqrt(D)
    s = (w_lat.astype(jnp.float32)
         @ (wstyle_raw * c_style).T.astype(jnp.float32)
         + bstyle[None, :].astype(jnp.float32))                          # (B, C_in)
    c_conv = 1.0 / math.sqrt(C_in * 9)
    w_flat = jnp.transpose(conv_w_raw.astype(jnp.float32) * c_conv,
                           (0, 2, 3, 1)).reshape(C_out, 9, C_in)         # tap-major, cin-minor
    wmod = w_flat[None] * s[:, None, None, :]                            # (B, C_out, 9, C_in)
    sigma_inv = jax.lax.rsqrt(
        jnp.sum(wmod * wmod, axis=(2, 3), keepdims=True) + EPS)
    wmod_k = (wmod * sigma_inv).reshape(B, C_out, 9 * C_in).astype(jnp.bfloat16)

    bias_k = bias.reshape(C_out, 1).astype(jnp.float32)
    scale_k = scale_noise.reshape(1).astype(jnp.float32)                 # SMEM scalar

    # ---- input preprocessing: zero-pad + flatten padded spatial -------------
    # Kept in (B, C_in, L) layout (no transpose copy); the kernel streams two
    # consecutive chunks per tile via two BlockSpecs on the same array.
    xpad = jnp.pad(x, ((0, 0), (0, 0), (1, 1), (1, 1)))                  # (B, C_in, Hp, Wp)
    xflat = jnp.pad(xpad.reshape(B, C_in, Hp * Wp),
                    ((0, 0), (0, 0), (0, L - Hp * Wp))).astype(jnp.bfloat16)

    noise_p = jnp.pad(noise, ((0, 0), (0, 0), (0, 0), (0, 2)))           # (B, 1, H, Wp)
    noise_flat = jnp.pad(noise_p.reshape(B, 1, Q),
                         ((0, 0), (0, 0), (0, Q_pad - Q))).astype(jnp.float32)

    # tap (kh, kw) of output q reads flattened padded index q + kh*Wp + kw
    tap_offsets = tuple(kh * Wp + kw for kh in range(3) for kw in range(3))
    kernel = functools.partial(_style_block_kernel,
                               tap_offsets=tap_offsets,
                               taps_per_matmul=taps_per_matmul,
                               tile_q=tile_q, c_in=C_in)

    out = pl.pallas_call(
        kernel,
        out_shape=jax.ShapeDtypeStruct((B, C_out, Q_pad), out_dtype),
        grid_spec=pltpu.PrefetchScalarGridSpec(
            num_scalar_prefetch=0,
            grid=(B, n_tiles),
            in_specs=[
                pl.BlockSpec((1, C_out, 9 * C_in), lambda b, t: (b, 0, 0)),   # modulated weights (per b)
                pl.BlockSpec((C_out, 1), lambda b, t: (0, 0)),                # output bias
                pl.BlockSpec(memory_space=pltpu.MemorySpace.SMEM),            # noise scale scalar
                pl.BlockSpec((1, C_in, tile_q), lambda b, t: (b, 0, t)),      # x chunk t
                pl.BlockSpec((1, C_in, tile_q), lambda b, t: (b, 0, t + 1)),  # x chunk t+1
                pl.BlockSpec((1, 1, tile_q), lambda b, t: (b, 0, t)),         # noise tile
            ],
            out_specs=pl.BlockSpec((1, C_out, tile_q), lambda b, t: (b, 0, t)),
        ),
        compiler_params=pltpu.CompilerParams(
            dimension_semantics=("parallel", "parallel"),
            vmem_limit_bytes=_vmem_limit_bytes()),
    )(wmod_k, bias_k, scale_k, xflat, xflat, noise_flat)

    # drop the per-row pad columns / tail padding and restore NCHW.
    # (Consumers that can accept the padded (B, C_out, Q_pad) layout should,
    #  to skip this extra output-sized HBM round trip.)
    return out[:, :, :Q].reshape(B, C_out, H, Wp)[:, :, :, :W]


def ref_style_block(x, w_lat, noise, params):
    """Pure-JAX f32 reference mirroring the PyTorch forward (NCHW)."""
    wstyle_raw, bstyle, conv_w_raw, scale_noise, bias = params
    B, C_in, H, W = x.shape
    D = w_lat.shape[1]
    C_out = conv_w_raw.shape[0]

    c_style = 1.0 / math.sqrt(D)
    s = w_lat @ (wstyle_raw * c_style).T + bstyle[None, :]               # (B, C_in)

    c_conv = 1.0 / math.sqrt(C_in * 9)
    weights = conv_w_raw * c_conv                                        # (C_out, C_in, 3, 3)
    wmod = weights[None] * s[:, None, :, None, None]
    sigma_inv = jax.lax.rsqrt(jnp.sum(wmod ** 2, axis=(2, 3, 4), keepdims=True) + EPS)
    wmod = wmod * sigma_inv

    ys = []
    for b in range(B):  # grouped conv (groups = batch), one group per sample
        ys.append(jax.lax.conv_general_dilated(
            x[b:b + 1], wmod[b], window_strides=(1, 1), padding=((1, 1), (1, 1)),
            dimension_numbers=('NCHW', 'OIHW', 'NCHW'),
            precision=jax.lax.Precision.HIGHEST))
    y = jnp.concatenate(ys, axis=0)
    y = y + scale_noise.reshape(1, 1, 1, 1) * noise
    y = y + bias.reshape(1, C_out, 1, 1)
    return jnp.where(y >= 0.0, y, LRELU_SLOPE * y)


if __name__ == "__main__":
    B, D, C_in, C_out, H, W = 2, 8, 4, 4, 16, 16

    key = jax.random.PRNGKey(0)
    k1, k2, k3, k4, k5, k6 = jax.random.split(key, 6)

    # inputs
    x = jax.random.normal(k1, (B, C_in, H, W), jnp.float32)
    w_lat = jax.random.normal(k2, (B, D), jnp.float32)
    noise = jax.random.normal(k3, (B, 1, H, W), jnp.float32)

    # parameters (synthetic init matching the module's parameter shapes;
    # scale_noise / bias made nonzero so the noise & bias paths are exercised)
    wstyle_raw = jax.random.normal(k4, (C_in, D), jnp.float32)           # EqualizedLinear weight
    bstyle = jnp.ones((C_in,), jnp.float32)                              # bias init = 1.0
    conv_w_raw = jax.random.normal(k5, (C_out, C_in, 3, 3), jnp.float32)
    scale_noise = jnp.full((1,), 0.3, jnp.float32)
    bias = 0.1 * jax.random.normal(k6, (C_out,), jnp.float32)
    params = (wstyle_raw, bstyle, conv_w_raw, scale_noise, bias)

    # tile_q=128 -> 3 spatial tiles / 4 chunks per sample: exercises the
    # streamed two-chunk (t, t+1) fetch, the grouped-tap matmuls, and the
    # lane-dense tiled output path.
    y = style_block_pallas(x, w_lat, noise, params, tile_q=128)
    y = jax.block_until_ready(y)

    y_ref = ref_style_block(x, w_lat, noise, params)
    err = float(jnp.max(jnp.abs(y - y_ref)))
    # bf16 MXU inputs (f32 accumulation) vs the all-f32 reference conv
    assert err < 5e-2, f"max abs err vs reference: {err}"
    print("KERNEL_OK")
</pallas_src>

<mosaic_0001>
module attributes {stable_mosaic.version = 11 : i64} {
  func.func @_style_block_kernel(%arg0: i32, %arg1: i32, %arg2: memref<1x4x36xbf16, #tpu.memory_space<vmem>>, %arg3: memref<4x1xf32, #tpu.memory_space<vmem>>, %arg4: memref<1xf32, #tpu.memory_space<smem>>, %arg5: memref<1x4x128xbf16, #tpu.memory_space<vmem>>, %arg6: memref<1x4x128xbf16, #tpu.memory_space<vmem>>, %arg7: memref<1x1x128xf32, #tpu.memory_space<vmem>>, %arg8: memref<1x4x128xf32, #tpu.memory_space<vmem>>) attributes {dimension_semantics = [#tpu.dimension_semantics<parallel>, #tpu.dimension_semantics<parallel>], iteration_bounds = array<i64: 2, 3>, scalar_prefetch = 0 : i64, scratch_operands = 0 : i64, tpu.core_type = #tpu.core_type<tc>, window_params = [{transform_indices = @transform_0, window_bounds = array<i64: 1, 4, 36>}, {pipeline_mode = #tpu.pipeline_mode<synchronous>, transform_indices = @transform_1, window_bounds = array<i64: 4, 1>}, {transform_indices = @transform_2, window_bounds = array<i64: 1>}, {transform_indices = @transform_3, window_bounds = array<i64: 1, 4, 128>}, {transform_indices = @transform_4, window_bounds = array<i64: 1, 4, 128>}, {transform_indices = @transform_5, window_bounds = array<i64: 1, 1, 128>}, {transform_indices = @transform_6, window_bounds = array<i64: 1, 4, 128>}]} {
    %c0 = arith.constant 0 : index
    %c0_0 = arith.constant 0 : index
    %c0_1 = arith.constant 0 : index
    %0 = vector.load %arg5[%c0, %c0_0, %c0_1] : memref<1x4x128xbf16, #tpu.memory_space<vmem>>, vector<1x4x128xbf16>
    %1 = vector.shape_cast %0 : vector<1x4x128xbf16> to vector<4x128xbf16>
    %c0_2 = arith.constant 0 : index
    %c0_3 = arith.constant 0 : index
    %c0_4 = arith.constant 0 : index
    %2 = vector.load %arg6[%c0_2, %c0_3, %c0_4] : memref<1x4x128xbf16, #tpu.memory_space<vmem>>, vector<1x4x128xbf16>
    %3 = vector.shape_cast %2 : vector<1x4x128xbf16> to vector<4x128xbf16>
    %4 = tpu.concatenate %1, %3 in 1 : vector<4x128xbf16>, vector<4x128xbf16> -> vector<4x256xbf16>
    %c0_5 = arith.constant 0 : index
    %c0_6 = arith.constant 0 : index
    %c0_7 = arith.constant 0 : index
    %5 = vector.load %arg2[%c0_5, %c0_6, %c0_7] : memref<1x4x36xbf16, #tpu.memory_space<vmem>>, vector<1x4x36xbf16>
    %6 = vector.shape_cast %5 : vector<1x4x36xbf16> to vector<4x36xbf16>
    %7 = vector.extract_strided_slice %4 {offsets = [0, 0], sizes = [4, 128], strides = [1, 1]} : vector<4x256xbf16> to vector<4x128xbf16>
    %8 = vector.extract_strided_slice %4 {offsets = [0, 1], sizes = [4, 128], strides = [1, 1]} : vector<4x256xbf16> to vector<4x128xbf16>
    %9 = vector.extract_strided_slice %4 {offsets = [0, 2], sizes = [4, 128], strides = [1, 1]} : vector<4x256xbf16> to vector<4x128xbf16>
    %10 = tpu.concatenate %7, %8, %9 in 0 : vector<4x128xbf16>, vector<4x128xbf16>, vector<4x128xbf16> -> vector<12x128xbf16>
    %11 = vector.extract_strided_slice %6 {offsets = [0, 0], sizes = [4, 12], strides = [1, 1]} : vector<4x36xbf16> to vector<4x12xbf16>
    %cst = arith.constant dense<0.000000e+00> : vector<4x128xf32>
    %12 = tpu.matmul %11, %10, %cst {dimension_numbers = #tpu.dot_dimension_numbers<[1], [0], [0], [1], [0, 0, 1, 1], [], []>} : vector<4x12xbf16>, vector<12x128xbf16>, vector<4x128xf32> -> vector<4x128xf32>
    %13 = vector.extract_strided_slice %4 {offsets = [0, 18], sizes = [4, 128], strides = [1, 1]} : vector<4x256xbf16> to vector<4x128xbf16>
    %14 = vector.extract_strided_slice %4 {offsets = [0, 19], sizes = [4, 128], strides = [1, 1]} : vector<4x256xbf16> to vector<4x128xbf16>
    %15 = vector.extract_strided_slice %4 {offsets = [0, 20], sizes = [4, 128], strides = [1, 1]} : vector<4x256xbf16> to vector<4x128xbf16>
    %16 = tpu.concatenate %13, %14, %15 in 0 : vector<4x128xbf16>, vector<4x128xbf16>, vector<4x128xbf16> -> vector<12x128xbf16>
    %17 = vector.extract_strided_slice %6 {offsets = [0, 12], sizes = [4, 12], strides = [1, 1]} : vector<4x36xbf16> to vector<4x12xbf16>
    %cst_8 = arith.constant dense<0.000000e+00> : vector<4x128xf32>
    %18 = tpu.matmul %17, %16, %cst_8 {dimension_numbers = #tpu.dot_dimension_numbers<[1], [0], [0], [1], [0, 0, 1, 1], [], []>} : vector<4x12xbf16>, vector<12x128xbf16>, vector<4x128xf32> -> vector<4x128xf32>
    %19 = arith.addf %12, %18 : vector<4x128xf32>
    %20 = vector.extract_strided_slice %4 {offsets = [0, 36], sizes = [4, 128], strides = [1, 1]} : vector<4x256xbf16> to vector<4x128xbf16>
    %21 = vector.extract_strided_slice %4 {offsets = [0, 37], sizes = [4, 128], strides = [1, 1]} : vector<4x256xbf16> to vector<4x128xbf16>
    %22 = vector.extract_strided_slice %4 {offsets = [0, 38], sizes = [4, 128], strides = [1, 1]} : vector<4x256xbf16> to vector<4x128xbf16>
    %23 = tpu.concatenate %20, %21, %22 in 0 : vector<4x128xbf16>, vector<4x128xbf16>, vector<4x128xbf16> -> vector<12x128xbf16>
    %24 = vector.extract_strided_slice %6 {offsets = [0, 24], sizes = [4, 12], strides = [1, 1]} : vector<4x36xbf16> to vector<4x12xbf16>
    %cst_9 = arith.constant dense<0.000000e+00> : vector<4x128xf32>
    %25 = tpu.matmul %24, %23, %cst_9 {dimension_numbers = #tpu.dot_dimension_numbers<[1], [0], [0], [1], [0, 0, 1, 1], [], []>} : vector<4x12xbf16>, vector<12x128xbf16>, vector<4x128xf32> -> vector<4x128xf32>
    %26 = arith.addf %19, %25 : vector<4x128xf32>
    %c0_10 = arith.constant 0 : index
    %27 = memref.load %arg4[%c0_10] : memref<1xf32, #tpu.memory_space<smem>>
    %c0_11 = arith.constant 0 : index
    %c0_12 = arith.constant 0 : index
    %c0_13 = arith.constant 0 : index
    %28 = vector.load %arg7[%c0_11, %c0_12, %c0_13] : memref<1x1x128xf32, #tpu.memory_space<vmem>>, vector<1x1x128xf32>
    %29 = vector.shape_cast %28 : vector<1x1x128xf32> to vector<1x128xf32>
    %30 = vector.broadcast %27 : f32 to vector<1x128xf32>
    %31 = arith.mulf %30, %29 : vector<1x128xf32>
    %32 = vector.broadcast %31 : vector<1x128xf32> to vector<4x128xf32>
    %33 = arith.addf %26, %32 : vector<4x128xf32>
    %c0_14 = arith.constant 0 : index
    %c0_15 = arith.constant 0 : index
    %34 = vector.load %arg3[%c0_14, %c0_15] : memref<4x1xf32, #tpu.memory_space<vmem>>, vector<4x1xf32>
    %35 = vector.broadcast %34 : vector<4x1xf32> to vector<4x128xf32>
    %36 = arith.addf %33, %35 : vector<4x128xf32>
    %cst_16 = arith.constant 0.000000e+00 : f32
    %37 = vector.broadcast %cst_16 : f32 to vector<4x128xf32>
    %38 = arith.cmpf oge, %36, %37 : vector<4x128xf32>
    %cst_17 = arith.constant 2.000000e-01 : f32
    %39 = vector.broadcast %cst_17 : f32 to vector<4x128xf32>
    %40 = arith.mulf %39, %36 : vector<4x128xf32>
    %41 = arith.select %38, %36, %40 : vector<4x128xi1>, vector<4x128xf32>
    %c0_18 = arith.constant 0 : index
    %c0_19 = arith.constant 0 : index
    %c0_20 = arith.constant 0 : index
    %42 = vector.load %arg8[%c0_18, %c0_19, %c0_20] : memref<1x4x128xf32, #tpu.memory_space<vmem>>, vector<1x4x128xf32>
    %43 = vector.shape_cast %42 : vector<1x4x128xf32> to vector<4x128xf32>
    %44 = vector.shape_cast %41 : vector<4x128xf32> to vector<1x4x128xf32>
    tpu.vector_store %arg8[%c0_18, %c0_19, %c0_20], %44 {strides = array<i32>} : memref<1x4x128xf32, #tpu.memory_space<vmem>>, vector<1x4x128xf32>,
    return
  }
  func.func @transform_0(%arg0: i32, %arg1: i32) -> (i32, i32, i32) {
    %c0_i32 = arith.constant 0 : i32
    %c0_i32_0 = arith.constant 0 : i32
    %c0_i32_1 = arith.constant 0 : i32
    return %arg0, %c0_i32, %c0_i32_0 : i32, i32, i32
  }
  func.func @transform_1(%arg0: i32, %arg1: i32) -> (i32, i32) {
    %c0_i32 = arith.constant 0 : i32
    %c0_i32_0 = arith.constant 0 : i32
    %c0_i32_1 = arith.constant 0 : i32
    return %c0_i32, %c0_i32_0 : i32, i32
  }
  func.func @transform_2(%arg0: i32, %arg1: i32) -> i32 {
    %c0_i32 = arith.constant 0 : i32
    %c0_i32_0 = arith.constant 0 : i32
    return %c0_i32 : i32
  }
  func.func @transform_3(%arg0: i32, %arg1: i32) -> (i32, i32, i32) {
    %c0_i32 = arith.constant 0 : i32
    %c0_i32_0 = arith.constant 0 : i32
    return %arg0, %c0_i32, %arg1 : i32, i32, i32
  }
  func.func @transform_4(%arg0: i32, %arg1: i32) -> (i32, i32, i32) {
    %c1_i32 = arith.constant 1 : i32
    %0 = arith.addi %arg1, %c1_i32 : i32
    %c0_i32 = arith.constant 0 : i32
    %c0_i32_0 = arith.constant 0 : i32
    return %arg0, %c0_i32, %0 : i32, i32, i32
  }
  func.func @transform_5(%arg0: i32, %arg1: i32) -> (i32, i32, i32) {
    %c0_i32 = arith.constant 0 : i32
    %c0_i32_0 = arith.constant 0 : i32
    return %arg0, %c0_i32, %arg1 : i32, i32, i32
  }
  func.func @transform_6(%arg0: i32, %arg1: i32) -> (i32, i32, i32) {
    %c0_i32 = arith.constant 0 : i32
    %c0_i32_0 = arith.constant 0 : i32
    return %arg0, %c0_i32, %arg1 : i32, i32, i32
  }
}

</mosaic_0001>

<llo_original>
// kernel: tpu_custom_call.1
$region0: #{tpu_custom_call.1}
  #allocation0 [shape = 'u32[]', space=smem, size = 0x4, offset = 0x4, fixed_abs, tag = 'smem constant byte address 0x4 - core index']
  #allocation1 [shape = 'u32[144,128]{1,0:T(1,128)}', space=vmem, size = 0x12000, scoped, tag = 'internal scratch']
  #allocation2 [shape = 'f32[1]{0:T(128)S(6)}', space=smem, size = 0x200, scoped, tag = 'scoped memory for tpu_custom_call.1']
  %s0 = inlined_call_operand.vmem [shape: bf16[2,4,36], index: 0, kind: input, shape index: {}]
  %s1 = inlined_call_operand.vmem [shape: f32[4,1], index: 1, kind: input, shape index: {}]
  %s2 = inlined_call_operand.<no memory space> [shape: f32[1], index: 2, kind: input, shape index: {}]
  %s3 = inlined_call_operand.hbm [shape: bf16[2,4,512], index: 3, kind: input, shape index: {}]
  %s4 = inlined_call_operand.hbm [shape: bf16[2,4,512], index: 4, kind: input, shape index: {}]
  %s5 = inlined_call_operand.vmem [shape: f32[2,1,384], index: 5, kind: input, shape index: {}]
  %s6 = inlined_call_operand.hbm [shape: f32[2,4,384], index: 6, kind: output, shape index: {}]
  %s7 = sld [smem:[#allocation0]]
  $region65: #{tpu_custom_call.1} parent=0
    _
  %s9 = ssub.s32 1, %s7
  %s10 = scalar_select 0, %s9, %s7
  %11 = sst [smem:[#allocation2]] %s2
  $region1: #{tpu_custom_call.1} parent=0
    #allocation3 [shape = 'u8[2048]{0}', space=vmem, size = 0x800, scoped, tag = 'input window, operand 3']
    #allocation4 [shape = 's32[2]{0}', space=sflag, size = 0x8, scoped, tag = 'scoped memory for tpu_custom_call.1']
    #allocation5 [shape = 's32[2]{0}', space=sflag, size = 0x8, scoped, tag = 'scoped memory for tpu_custom_call.1']
    #allocation6 [shape = 'u8[2048]{0}', space=vmem, size = 0x800, scoped, tag = 'input window, operand 4']
    #allocation7 [shape = 's32[2]{0}', space=sflag, size = 0x8, scoped, tag = 'scoped memory for tpu_custom_call.1']
    #allocation8 [shape = 'u8[4096]{0}', space=vmem, size = 0x1000, scoped, tag = 'output window, operand 0']
    %12 = vsyncpa [#allocation4], 0
    %s13 = scalar_lea.sflag [#allocation4], 1
    %14 = vsyncpa %s13, 0
    %15 = vsyncpa [#allocation7], 0
    %s16 = scalar_lea.sflag [#allocation7], 1
    %17 = vsyncpa %s16, 0
    %18 = vsyncpa [#allocation5], 0
    %s19 = scalar_lea.sflag [#allocation5], 1
    %20 = vsyncpa %s19, 0
    loop: start=0, step=1, limit=8
    $region2: #{tpu_custom_call.1} parent=1 // loop_pre_header
      _
    $region3: #{tpu_custom_call.1} parent=1 // loop_header
      %s22 = sphi 0, %s26
      %p23 = scmp.ge.s32.totalorder %s22, 8
      %s29 = sphi 0, %s41
      %s30 = sphi 0, %s37
      %s31 = sphi 0, %s29
      %s32 = sphi 0, %s30
      %s33 = sphi 0, %s31
      %s34 = sphi 0, %s32
      %s44 = sphi 0, %s46
      %s47 = sphi 0, %s44
      %s48 = sphi 0, %s47
      %s64 = sphi 0, %s48
      %s68 = sphi 0, %s68
      %s70 = sphi 0, %s68
      %s71 = sphi 0, %s70
      %s85 = sphi 0, %s71
      %s89 = sphi 0, %s89
      %s91 = sphi 0, %s89
      %s92 = sphi 0, %s91
      %s106 = sphi 0, %s92
      %s114 = sphi 0, %s116
      %s117 = sphi 0, %s114
      %s118 = sphi 0, %s117
      %s134 = sphi 0, %s118
      %s144 = sphi 0, %s146
      %s147 = sphi 0, %s144
      %s148 = sphi 0, %s147
      %s164 = sphi 0, %s148
      %s172 = sphi 0, %s174
      %s175 = sphi 0, %s172
      %s176 = sphi 0, %s175
      %s192 = sphi 0, %s176
      %s200 = sphi 0, %s202
      %s203 = sphi 0, %s200
      %s204 = sphi 0, %s203
      %s220 = sphi 0, %s204
    $region4: #{tpu_custom_call.1} parent=1 // loop_header_branch
      %25 = sbr.rel (%p23) target = $region8
    $region5: #{tpu_custom_call.1} parent=1 // loop_body
      %s27 = ssub.s32 %s22, 1
      %s28 = ssub.s32 %s22, 2
      %s35 = sadd.s32 1, %s30
      %p36 = scmp.ge.s32.totalorder %s35, 3
      %s37 = scalar_select %p36, 0, %s35
      %s38 = sadd.s32 1, %s29
      %s39 = scalar_select %p36, %s38, %s29
      %p40 = scmp.ge.s32.totalorder %s39, 2
      %s41 = scalar_select %p40, 0, %s39
      %s42 = ssub.s32 %s29, %s41
      %p43 = scmp.eq.s32.totalorder %s42, 0
      %s45 = sadd.s32 %s44, 1
      %s46 = scalar_select %p43, %s44, %s45
      %p49 = pneg %p43
      %p50 = scmp.eq.s32.totalorder %s22, 5
      %p51 = por %p49, %p50
      %p52 = scmp.ne.s32.totalorder %s44, %s47
      %p53 = scmp.eq.s32.totalorder %s22, 0
      %p54 = por %p52, %p53
      %p55 = scmp.ne.s32.totalorder %s44, %s47
      %p56 = scmp.eq.s32.totalorder %s27, 5
      %p57 = por %p55, %p56
      %p58 = scmp.ne.s32.totalorder %s47, %s48
      %p59 = scmp.eq.s32.totalorder %s27, 0
      %p60 = por %p58, %p59
      %p61 = scmp.ne.s32.totalorder %s47, %s48
      %p62 = scmp.eq.s32.totalorder %s28, 5
      %p63 = por %p61, %p62
      %p65 = scmp.ne.s32.totalorder %s48, %s64
      %p66 = scmp.eq.s32.totalorder %s28, 0
      %p67 = por %p65, %p66
      %s69 = sadd.s32 %s68, 1
      %p72 = scmp.eq.s32.totalorder %s22, 5
      %p73 = scmp.ne.s32.totalorder %s68, %s70
      %p74 = scmp.eq.s32.totalorder %s22, 0
      %p75 = por %p73, %p74
      %p76 = scmp.ne.s32.totalorder %s68, %s70
      %p77 = scmp.eq.s32.totalorder %s27, 5
      %p78 = por %p76, %p77
      %p79 = scmp.ne.s32.totalorder %s70, %s71
      %p80 = scmp.eq.s32.totalorder %s27, 0
      %p81 = por %p79, %p80
      %p82 = scmp.ne.s32.totalorder %s70, %s71
      %p83 = scmp.eq.s32.totalorder %s28, 5
      %p84 = por %p82, %p83
      %p86 = scmp.ne.s32.totalorder %s71, %s85
      %p87 = scmp.eq.s32.totalorder %s28, 0
      %p88 = por %p86, %p87
      %s90 = sadd.s32 %s89, 1
      %p93 = scmp.eq.s32.totalorder %s22, 5
      %p94 = scmp.ne.s32.totalorder %s89, %s91
      %p95 = scmp.eq.s32.totalorder %s22, 0
      %p96 = por %p94, %p95
      %p97 = scmp.ne.s32.totalorder %s89, %s91
      %p98 = scmp.eq.s32.totalorder %s27, 5
      %p99 = por %p97, %p98
      %p100 = scmp.ne.s32.totalorder %s91, %s92
      %p101 = scmp.eq.s32.totalorder %s27, 0
      %p102 = por %p100, %p101
      %p103 = scmp.ne.s32.totalorder %s91, %s92
      %p104 = scmp.eq.s32.totalorder %s28, 5
      %p105 = por %p103, %p104
      %p107 = scmp.ne.s32.totalorder %s92, %s106
      %p108 = scmp.eq.s32.totalorder %s28, 0
      %p109 = por %p107, %p108
      %s110 = ssub.s32 %s29, %s41
      %s111 = ssub.s32 %s30, %s37
      %s112 = sor.u32 %s110, %s111
      %p113 = scmp.eq.s32.totalorder %s112, 0
      %s115 = sadd.s32 %s114, 1
      %s116 = scalar_select %p113, %s114, %s115
      %p119 = pneg %p113
      %p120 = scmp.eq.s32.totalorder %s22, 5
      %p121 = por %p119, %p120
      %p122 = scmp.ne.s32.totalorder %s114, %s117
      %p123 = scmp.eq.s32.totalorder %s22, 0
      %p124 = por %p122, %p123
      %p125 = scmp.ne.s32.totalorder %s114, %s117
      %p126 = scmp.eq.s32.totalorder %s27, 5
      %p127 = por %p125, %p126
      %p128 = scmp.ne.s32.totalorder %s117, %s118
      %p129 = scmp.eq.s32.totalorder %s27, 0
      %p130 = por %p128, %p129
      %p131 = scmp.ne.s32.totalorder %s117, %s118
      %p132 = scmp.eq.s32.totalorder %s28, 5
      %p133 = por %p131, %p132
      %p135 = scmp.ne.s32.totalorder %s118, %s134
      %p136 = scmp.eq.s32.totalorder %s28, 0
      %p137 = por %p135, %p136
      %s138 = sadd.s32 %s30, 1
      %s139 = sadd.s32 %s37, 1
      %s140 = ssub.s32 %s29, %s41
      %s141 = ssub.s32 %s138, %s139
      %s142 = sor.u32 %s140, %s141
      %p143 = scmp.eq.s32.totalorder %s142, 0
      %s145 = sadd.s32 %s144, 1
      %s146 = scalar_select %p143, %s144, %s145
      %p149 = pneg %p143
      %p150 = scmp.eq.s32.totalorder %s22, 5
      %p151 = por %p149, %p150
      %p152 = scmp.ne.s32.totalorder %s144, %s147
      %p153 = scmp.eq.s32.totalorder %s22, 0
      %p154 = por %p152, %p153
      %p155 = scmp.ne.s32.totalorder %s144, %s147
      %p156 = scmp.eq.s32.totalorder %s27, 5
      %p157 = por %p155, %p156
      %p158 = scmp.ne.s32.totalorder %s147, %s148
      %p159 = scmp.eq.s32.totalorder %s27, 0
      %p160 = por %p158, %p159
      %p161 = scmp.ne.s32.totalorder %s147, %s148
      %p162 = scmp.eq.s32.totalorder %s28, 5
      %p163 = por %p161, %p162
      %p165 = scmp.ne.s32.totalorder %s148, %s164
      %p166 = scmp.eq.s32.totalorder %s28, 0
      %p167 = por %p165, %p166
      %s168 = ssub.s32 %s29, %s41
      %s169 = ssub.s32 %s30, %s37
      %s170 = sor.u32 %s168, %s169
      %p171 = scmp.eq.s32.totalorder %s170, 0
      %s173 = sadd.s32 %s172, 1
      %s174 = scalar_select %p171, %s172, %s173
      %p177 = pneg %p171
      %p178 = scmp.eq.s32.totalorder %s22, 5
      %p179 = por %p177, %p178
      %p180 = scmp.ne.s32.totalorder %s172, %s175
      %p181 = scmp.eq.s32.totalorder %s22, 0
      %p182 = por %p180, %p181
      %p183 = scmp.ne.s32.totalorder %s172, %s175
      %p184 = scmp.eq.s32.totalorder %s27, 5
      %p185 = por %p183, %p184
      %p186 = scmp.ne.s32.totalorder %s175, %s176
      %p187 = scmp.eq.s32.totalorder %s27, 0
      %p188 = por %p186, %p187
      %p189 = scmp.ne.s32.totalorder %s175, %s176
      %p190 = scmp.eq.s32.totalorder %s28, 5
      %p191 = por %p189, %p190
      %p193 = scmp.ne.s32.totalorder %s176, %s192
      %p194 = scmp.eq.s32.totalorder %s28, 0
      %p195 = por %p193, %p194
      %s196 = ssub.s32 %s29, %s41
      %s197 = ssub.s32 %s30, %s37
      %s198 = sor.u32 %s196, %s197
      %p199 = scmp.eq.s32.totalorder %s198, 0
      %s201 = sadd.s32 %s200, 1
      %s202 = scalar_select %p199, %s200, %s201
      %p205 = pneg %p199
      %p206 = scmp.eq.s32.totalorder %s22, 5
      %p207 = por %p205, %p206
      %p208 = scmp.ne.s32.totalorder %s200, %s203
      %p209 = scmp.eq.s32.totalorder %s22, 0
      %p210 = por %p208, %p209
      %p211 = scmp.ne.s32.totalorder %s200, %s203
      %p212 = scmp.eq.s32.totalorder %s27, 5
      %p213 = por %p211, %p212
      %p214 = scmp.ne.s32.totalorder %s203, %s204
      %p215 = scmp.eq.s32.totalorder %s27, 0
      %p216 = por %p214, %p215
      %p217 = scmp.ne.s32.totalorder %s203, %s204
      %p218 = scmp.eq.s32.totalorder %s28, 5
      %p219 = por %p217, %p218
      %p221 = scmp.ne.s32.totalorder %s204, %s220
      %p222 = scmp.eq.s32.totalorder %s28, 0
      %p223 = por %p221, %p222
      %p224 = scmp.le.s32.totalorder 1, %s22
      %p225 = scmp.lt.s32.totalorder %s22, 7
      %p226 = pnand %p224, %p225
      %p227 = pneg %p226
      // Predicated region
      $region9: #{tpu_custom_call.1} parent=5 // pred_check
        _
      $region10: #{tpu_custom_call.1} parent=5 // pred_check_branch
        %229 = sbr.rel (%p226) target = $region12
      $region11: #{tpu_custom_call.1} parent=5 // pred_region
        %s230 = ssub.s32 %s22, 1
        // Predicated region
        $region13: #{tpu_custom_call.1} parent=11 // pred_check
          %p231 = pneg %p81
        $region14: #{tpu_custom_call.1} parent=11 // pred_check_branch
          %233 = sbr.rel (%p231) target = $region16
        $region15: #{tpu_custom_call.1} parent=11 // pred_region
          _
        $region16: #{tpu_custom_call.1} parent=11 // pred_fallthru
          _
        // Predicated region
        $region17: #{tpu_custom_call.1} parent=11 // pred_check
          %p234 = pneg %p102
        $region18: #{tpu_custom_call.1} parent=11 // pred_check_branch
          %236 = sbr.rel (%p234) target = $region20
        $region19: #{tpu_custom_call.1} parent=11 // pred_region
          _
        $region20: #{tpu_custom_call.1} parent=11 // pred_fallthru
          _
      $region12: #{tpu_custom_call.1} parent=5 // pred_fallthru
        _
      %p237 = scmp.lt.s32.totalorder %s22, 6
      // Predicated region
      $region21: #{tpu_custom_call.1} parent=5 // pred_check
        %p238 = pneg %p237
      $region22: #{tpu_custom_call.1} parent=5 // pred_check_branch
        %240 = sbr.rel (%p238) target = $region24
      $region23: #{tpu_custom_call.1} parent=5 // pred_region
        // Predicated region
        $region25: #{tpu_custom_call.1} parent=23 // pred_check
          %p241 = pneg %p54
        $region26: #{tpu_custom_call.1} parent=23 // pred_check_branch
          %243 = sbr.rel (%p241) target = $region28
        $region27: #{tpu_custom_call.1} parent=23 // pred_region
          %p244 = scmp.lt.s32.totalorder %s29, 1
          %s245 = scalar_select %p244, %s29, 1
          %s246 = smul.addr %s245, 2
          %s247 = scalar_lea.vmem %s0, %s246
        $region28: #{tpu_custom_call.1} parent=23 // pred_fallthru
          _
        // Predicated region
        $region29: #{tpu_custom_call.1} parent=23 // pred_check
          %p248 = pneg %p124
        $region30: #{tpu_custom_call.1} parent=23 // pred_check_branch
          %250 = sbr.rel (%p248) target = $region32
        $region31: #{tpu_custom_call.1} parent=23 // pred_region
          %s251 = sand.u32 %s114, 1
          %s252 = scalar_lea.sflag [#allocation4], %s251
          %s253 = sand.u32 %s114, 1
          %s254 = smul.addr %s253, 2
          %s255 = scalar_lea.vmem [#allocation3], %s254
          %s257 = ssub.s32 32, 32
          %258 = vsyncadd %s252, %s257
          %s259 = smul.addr %s29, 4
          %s260 = sadd.s32 %s30, %s259
          %s261 = smul.addr %s260, 32
          %s262 = scalar_lea.hbm %s3, %s261
          %s264 = sshll.u32 %s255, 4
          %s265 = int_to_ptr.vmem [resolvable:$true] %s264
          %267 = dma.hbm_to_vmem [thread:$0]  %s262, 32, %s265, %s252
        $region32: #{tpu_custom_call.1} parent=23 // pred_fallthru
          _
        // Predicated region
        $region33: #{tpu_custom_call.1} parent=23 // pred_check
          %p268 = pneg %p154
        $region34: #{tpu_custom_call.1} parent=23 // pred_check_branch
          %270 = sbr.rel (%p268) target = $region36
        $region35: #{tpu_custom_call.1} parent=23 // pred_region
          %s271 = sand.u32 %s144, 1
          %s272 = scalar_lea.sflag [#allocation7], %s271
          %s273 = sand.u32 %s144, 1
          %s274 = smul.addr %s273, 2
          %s275 = scalar_lea.vmem [#allocation6], %s274
          %s276 = sadd.s32 %s30, 1
          %s278 = ssub.s32 32, 32
          %279 = vsyncadd %s272, %s278
          %s280 = smul.addr %s29, 4
          %s281 = sadd.s32 %s276, %s280
          %s282 = smul.addr %s281, 32
          %s283 = scalar_lea.hbm %s4, %s282
          %s285 = sshll.u32 %s275, 4
          %s286 = int_to_ptr.vmem [resolvable:$true] %s285
          %288 = dma.hbm_to_vmem [thread:$0]  %s283, 32, %s286, %s272
        $region36: #{tpu_custom_call.1} parent=23 // pred_fallthru
          _
        // Predicated region
        $region37: #{tpu_custom_call.1} parent=23 // pred_check
          %p289 = pneg %p182
        $region38: #{tpu_custom_call.1} parent=23 // pred_check_branch
          %291 = sbr.rel (%p289) target = $region40
        $region39: #{tpu_custom_call.1} parent=23 // pred_region
          %p292 = scmp.lt.s32.totalorder %s29, 1
          %s293 = scalar_select %p292, %s29, 1
          %p294 = scmp.lt.s32.totalorder %s30, 2
          %s295 = scalar_select %p294, %s30, 2
          %s296 = smul.addr %s293, 3
          %s297 = sadd.s32 %s295, %s296
          %s298 = scalar_lea.vmem %s5, %s297
        $region40: #{tpu_custom_call.1} parent=23 // pred_fallthru
          _
      $region24: #{tpu_custom_call.1} parent=5 // pred_fallthru
        _
      %p299 = scmp.le.s32.totalorder 1, %s22
      %p300 = scmp.lt.s32.totalorder %s22, 7
      %p301 = pnand %p299, %p300
      %p302 = pneg %p301
      // Predicated region
      $region41: #{tpu_custom_call.1} parent=5 // pred_check
        _
      $region42: #{tpu_custom_call.1} parent=5 // pred_check_branch
        %304 = sbr.rel (%p301) target = $region44
      $region43: #{tpu_custom_call.1} parent=5 // pred_region
        %s305 = ssub.s32 %s22, 1
        %s306 = sand.u32 %s117, 1
        %s307 = scalar_lea.sflag [#allocation4], %s306
        %s308 = sand.u32 %s117, 1
        %s309 = smul.addr %s308, 2
        %s310 = scalar_lea.vmem [#allocation3], %s309
        // Predicated region
        $region45: #{tpu_custom_call.1} parent=43 // pred_check
          %p311 = pneg %p130
        $region46: #{tpu_custom_call.1} parent=43 // pred_check_branch
          %313 = sbr.rel (%p311) target = $region48
        $region47: #{tpu_custom_call.1} parent=43 // pred_region
          %314 = dma.done %s307, 32
        $region48: #{tpu_custom_call.1} parent=43 // pred_fallthru
          _
        %s315 = sand.u32 %s147, 1
        %s316 = scalar_lea.sflag [#allocation7], %s315
        %s317 = sand.u32 %s147, 1
        %s318 = smul.addr %s317, 2
        %s319 = scalar_lea.vmem [#allocation6], %s318
        // Predicated region
        $region49: #{tpu_custom_call.1} parent=43 // pred_check
          %p320 = pneg %p160
        $region50: #{tpu_custom_call.1} parent=43 // pred_check_branch
          %322 = sbr.rel (%p320) target = $region52
        $region51: #{tpu_custom_call.1} parent=43 // pred_region
          %323 = dma.done %s316, 32
        $region52: #{tpu_custom_call.1} parent=43 // pred_fallthru
          _
        %p324 = scmp.lt.s32.totalorder %s31, 1
        %s325 = scalar_select %p324, %s31, 1
        %s326 = smul.addr %s325, 2
        %s327 = scalar_lea.vmem %s0, %s326
        %p328 = pneg %p60
        %p329 = pneg %p57
        %p330 = pneg %p81
        %p331 = pneg %p78
        %p332 = pneg %p102
        %p333 = pneg %p99
        %s334 = sand.u32 %s117, 1
        %s335 = scalar_lea.sflag [#allocation4], %s334
        %s336 = sand.u32 %s117, 1
        %s337 = smul.addr %s336, 2
        %s338 = scalar_lea.vmem [#allocation3], %s337
        %p339 = pneg %p130
        %p340 = pneg %p127
        %s341 = sand.u32 %s147, 1
        %s342 = scalar_lea.sflag [#allocation7], %s341
        %s343 = sand.u32 %s147, 1
        %s344 = smul.addr %s343, 2
        %s345 = scalar_lea.vmem [#allocation6], %s344
        %p346 = pneg %p160
        %p347 = pneg %p157
        %p348 = scmp.lt.s32.totalorder %s31, 1
        %s349 = scalar_select %p348, %s31, 1
        %p350 = scmp.lt.s32.totalorder %s32, 2
        %s351 = scalar_select %p350, %s32, 2
        %s352 = smul.addr %s349, 3
        %s353 = sadd.s32 %s351, %s352
        %s354 = scalar_lea.vmem %s5, %s353
        %p355 = pneg %p188
        %p356 = pneg %p185
        %p357 = pneg %p216
        %p358 = pneg %p213
        %s359 = sand.u32 %s203, 1
        %s360 = scalar_lea.sflag [#allocation5], %s359
        %s361 = sand.u32 %s203, 1
        %s362 = smul.addr %s361, 4
        %s363 = scalar_lea.vmem [#allocation8], %s362
        %p364 = scmp.lt.s32.totalorder %s31, 1
        %s365 = scalar_select %p364, %s31, 1
        %s366 = smul.addr %s365, 2
        %s367 = scalar_lea.vmem %s0, %s366
        %s368 = sadd.s32 %s32, 1
        %p369 = scmp.lt.s32.totalorder %s31, 1
        %s370 = scalar_select %p369, %s31, 1
        %p371 = scmp.lt.s32.totalorder %s32, 2
        %s372 = scalar_select %p371, %s32, 2
        %s373 = smul.addr %s370, 3
        %s374 = sadd.s32 %s372, %s373
        %s375 = scalar_lea.vmem %s5, %s374
        %v377 = vld [vmem:[%s310] sm:$0x3]
        %v378 = vld [vmem:[%s319] sm:$0x3]
        %v379 = vld [vmem:[%s367] sm:$0x3]
        %v382 = vrot.slane %v377, 6
        %v383 = vrot.slane %v378, 6
        %384 = vrot.lane.b32.xlu0 %v382, 127
        %v385 = vpop.permute.xlu0 %384
        %386 = vrot.lane.b32.xlu0 %v383, 127
        %v387 = vpop.permute.xlu0 %386
        %vm388 = vcmask 1039360
        %v389 = vsel %vm388, %v385, %v387
        %v390 = vrot.slane %v377, 4
        %v391 = vrot.slane %v378, 4
        %392 = vrot.lane.b32.xlu0 %v390, 126
        %v393 = vpop.permute.xlu0 %392
        %394 = vrot.lane.b32.xlu0 %v391, 126
        %v395 = vpop.permute.xlu0 %394
        %vm396 = vcmask 1031168
        %v397 = vsel %vm396, %v393, %v395
        %vm398 = vcmask 1041408
        %v401 = vsel %vm398, %v377, %v389
        %vm402 = vcmask 1043456
        %v404 = vsel %vm402, %v401, %v397
        %v407 = vsel %vm398, %v378, %v387
        %v409 = vsel %vm402, %v407, %v395
        %v412 = vunpack.c.l.s4 1983009808
        %v413 = vunpack.c.0.s8 %v412
        %v414 = vlaneseq
        %v415 = vshrl.u32 %v414, 7
        %v416 = vsub.s32 %v413, %v415
        %v417 = vrot.slane %v379, %v416
        %418 = vrot.lane.b32.xlu0 %v417, 116
        %v419 = vpop.permute.xlu0 %418
        %422 = vrot.lane.b32.xlu0 %v404, 110
        %v423 = vpop.permute.xlu0 %422
        %424 = vrot.lane.b32.xlu0 %v409, 110
        %v425 = vpop.permute.xlu0 %424
        %vm426 = vcmask 900096
        %v427 = vsel %vm426, %v423, %v425
        %vm428 = vcmask 97280
        %v430 = vsel %vm428, %v419, 0
        %vm432 = vcmask 1045504
        %v434 = vsel %vm432, %v427, 0
        %436 = vmatprep.subr.bf16.mxu0 0
        %437 = vmatpush1.bf16.msra.mxu0 0
        %438 = vmatprep.subr.bf16.mxu0 0
        %439 = vmatpush1.bf16.msra.mxu0 0
        %440 = vmatprep.subr.bf16.mxu0 0
        %441 = vmatpush1.bf16.msra.mxu0 0
        %442 = vmatprep.subr.bf16.mxu0 0
        %443 = vmatpush1.bf16.msra.mxu0 0
        %444 = vmatprep.subr.bf16.mxu0 0
        %445 = vmatpush1.bf16.msra.mxu0 0
        %446 = vmatprep.subr.bf16.mxu0 0
        %447 = vmatpush1.bf16.msra.mxu0 0
        %448 = vmatprep.subr.bf16.mxu0 0
        %449 = vmatpush1.bf16.msra.mxu0 0
        %450 = vmatprep.subr.bf16.mxu0 0
        %451 = vmatpush1.bf16.msra.mxu0 %v434
        %452 = vmatprep.subr.bf16.mxu0 0
        %453 = vmatpush2.bf16.msra.mxu0 0
        %454 = vmatprep.subr.bf16.mxu0 0
        %455 = vmatpush2.bf16.msra.mxu0 0
        %456 = vmatprep.subr.bf16.mxu0 0
        %457 = vmatpush2.bf16.msra.mxu0 0
        %458 = vmatprep.subr.bf16.mxu0 0
        %459 = vmatpush2.bf16.msra.mxu0 0
        %460 = vmatprep.subr.bf16.mxu0 0
        %461 = vmatpush2.bf16.msra.mxu0 0
        %462 = vmatprep.subr.bf16.mxu0 0
        %463 = vmatpush2.bf16.msra.mxu0 0
        %464 = vmatprep.subr.bf16.mxu0 0
        %465 = vmatpush2.bf16.msra.mxu0 0
        %466 = vmatprep.subr.bf16.mxu0 0
        %467 = vmatpush2.bf16.msra.mxu0 0
        %468 = vmatprep.mubr.bf16.mxu0 0
        %469 = vmatmul.mubr.bf16.gmra.mxu0 %v430
        %v470 = vpop.f32.mrf.mxu0
        %v471 = vadd.f32 0.0, %v470
        %v472 = vpop.f32.mrf.mxu0
        %v473 = vpop.f32.mrf.mxu0
        %v474 = vpop.f32.mrf.mxu0
        %475 = vdwg.mxu0
        %v477 = vsel %vm428, %v379, 0
        %v479 = vsel %vm432, %v404, 0
        %481 = vmatprep.subr.bf16.mxu0 0
        %482 = vmatpush1.bf16.msra.mxu0 0
        %483 = vmatprep.subr.bf16.mxu0 0
        %484 = vmatpush1.bf16.msra.mxu0 0
        %485 = vmatprep.subr.bf16.mxu0 0
        %486 = vmatpush1.bf16.msra.mxu0 0
        %487 = vmatprep.subr.bf16.mxu0 0
        %488 = vmatpush1.bf16.msra.mxu0 0
        %489 = vmatprep.subr.bf16.mxu0 0
        %490 = vmatpush1.bf16.msra.mxu0 0
        %491 = vmatprep.subr.bf16.mxu0 0
        %492 = vmatpush1.bf16.msra.mxu0 0
        %493 = vmatprep.subr.bf16.mxu0 0
        %494 = vmatpush1.bf16.msra.mxu0 0
        %495 = vmatprep.subr.bf16.mxu0 0
        %496 = vmatpush1.bf16.msra.mxu0 %v479
        %497 = vmatprep.subr.bf16.mxu0 0
        %498 = vmatpush2.bf16.msra.mxu0 0
        %499 = vmatprep.subr.bf16.mxu0 0
        %500 = vmatpush2.bf16.msra.mxu0 0
        %501 = vmatprep.subr.bf16.mxu0 0
        %502 = vmatpush2.bf16.msra.mxu0 0
        %503 = vmatprep.subr.bf16.mxu0 0
        %504 = vmatpush2.bf16.msra.mxu0 0
        %505 = vmatprep.subr.bf16.mxu0 0
        %506 = vmatpush2.bf16.msra.mxu0 0
        %507 = vmatprep.subr.bf16.mxu0 0
        %508 = vmatpush2.bf16.msra.mxu0 0
        %509 = vmatprep.subr.bf16.mxu0 0
        %510 = vmatpush2.bf16.msra.mxu0 0
        %511 = vmatprep.subr.bf16.mxu0 0
        %512 = vmatpush2.bf16.msra.mxu0 0
        %513 = vmatprep.mubr.bf16.mxu0 0
        %514 = vmatmul.mubr.bf16.gmra.mxu0 %v477
        %v515 = vpop.f32.mrf.mxu0
        %v516 = vadd.f32 %v471, %v515
        %v517 = vpop.f32.mrf.mxu0
        %v518 = vpop.f32.mrf.mxu0
        %v519 = vpop.f32.mrf.mxu0
        %520 = vdwg.mxu0
        %521 = vrot.lane.b32.xlu0 %v417, 104
        %v522 = vpop.permute.xlu0 %521
        %523 = vrot.lane.b32.xlu0 %v404, 92
        %v524 = vpop.permute.xlu0 %523
        %525 = vrot.lane.b32.xlu0 %v409, 92
        %v526 = vpop.permute.xlu0 %525
        %vm527 = vcmask 752640
        %v528 = vsel %vm527, %v524, %v526
        %v530 = vsel %vm428, %v522, 0
        %v533 = vsel %vm432, %v528, 0
        %535 = vmatprep.subr.bf16.mxu0 0
        %536 = vmatpush1.bf16.msra.mxu0 0
        %537 = vmatprep.subr.bf16.mxu0 0
        %538 = vmatpush1.bf16.msra.mxu0 0
        %539 = vmatprep.subr.bf16.mxu0 0
        %540 = vmatpush1.bf16.msra.mxu0 0
        %541 = vmatprep.subr.bf16.mxu0 0
        %542 = vmatpush1.bf16.msra.mxu0 0
        %543 = vmatprep.subr.bf16.mxu0 0
        %544 = vmatpush1.bf16.msra.mxu0 0
        %545 = vmatprep.subr.bf16.mxu0 0
        %546 = vmatpush1.bf16.msra.mxu0 0
        %547 = vmatprep.subr.bf16.mxu0 0
        %548 = vmatpush1.bf16.msra.mxu0 0
        %549 = vmatprep.subr.bf16.mxu0 0
        %550 = vmatpush1.bf16.msra.mxu0 %v533
        %551 = vmatprep.subr.bf16.mxu0 0
        %552 = vmatpush2.bf16.msra.mxu0 0
        %553 = vmatprep.subr.bf16.mxu0 0
        %554 = vmatpush2.bf16.msra.mxu0 0
        %555 = vmatprep.subr.bf16.mxu0 0
        %556 = vmatpush2.bf16.msra.mxu0 0
        %557 = vmatprep.subr.bf16.mxu0 0
        %558 = vmatpush2.bf16.msra.mxu0 0
        %559 = vmatprep.subr.bf16.mxu0 0
        %560 = vmatpush2.bf16.msra.mxu0 0
        %561 = vmatprep.subr.bf16.mxu0 0
        %562 = vmatpush2.bf16.msra.mxu0 0
        %563 = vmatprep.subr.bf16.mxu0 0
        %564 = vmatpush2.bf16.msra.mxu0 0
        %565 = vmatprep.subr.bf16.mxu0 0
        %566 = vmatpush2.bf16.msra.mxu0 0
        %567 = vmatprep.mubr.bf16.mxu0 0
        %568 = vmatmul.mubr.bf16.gmra.mxu0 %v530
        %v569 = vpop.f32.mrf.mxu0
        %v570 = vadd.f32 0.0, %v569
        %v571 = vpop.f32.mrf.mxu0
        %v572 = vpop.f32.mrf.mxu0
        %v573 = vpop.f32.mrf.mxu0
        %574 = vdwg.mxu0
        %v575 = vadd.f32 %v516, %v570
        %s576 = sld [smem:[#allocation2]]
        %v577 = vld [vmem:[%s375] sm:$0x1]
        %v578 = vstv %s576
        %v579 = vmul.f32 %v578, %v577
        %v581 = vlaneseq
        %v582 = vshrl.u32 %v581, 7
        %v583 = vsub.s32 0, %v582
        %v584 = vrot.slane %v579, %v583
        %v586 = vadd.f32 %v575, %v584
        %v587 = vld [vmem:[%s1] sm:$0xf]
        %589 = vset.pattern.permute.xlu0 0
        %590 = vperm.xlu0 %589, %v587
        %v591 = vpop.permute.xlu0 %590
        %v593 = vadd.f32 %v586, %v591
        %vm594 = vcmp.ge.f32.partialorder %v593, 0.0
        %v595 = vmul.f32 %v593, 0.2
        %v596 = vsel %vm594, %v593, %v595
        %597 = vst [vmem:[%s363] sm:$0xf] %v596
        %s598 = sand.u32 %s203, 1
        %s599 = scalar_lea.sflag [#allocation5], %s598
        %s600 = sand.u32 %s203, 1
        %s601 = smul.addr %s600, 4
        %s602 = scalar_lea.vmem [#allocation8], %s601
        // Predicated region
        $region53: #{tpu_custom_call.1} parent=43 // pred_check
          %p603 = pneg %p213
        $region54: #{tpu_custom_call.1} parent=43 // pred_check_branch
          %605 = sbr.rel (%p603) target = $region56
        $region55: #{tpu_custom_call.1} parent=43 // pred_region
          %s607 = ssub.s32 64, 64
          %608 = vsyncadd %s599, %s607
          %s609 = smul.addr %s31, 3
          %s610 = sadd.s32 %s32, %s609
          %s611 = smul.addr %s610, 64
          %s612 = scalar_lea.hbm %s6, %s611
          %s614 = sshll.u32 %s602, 4
          %s615 = int_to_ptr.vmem [resolvable:$true] %s614
          %617 = dma.vmem_to_hbm [thread:$0]  %s615, 64, %s612, %s599
        $region56: #{tpu_custom_call.1} parent=43 // pred_fallthru
          _
      $region44: #{tpu_custom_call.1} parent=5 // pred_fallthru
        _
      %p618 = scmp.le.s32.totalorder 2, %s22
      // Predicated region
      $region57: #{tpu_custom_call.1} parent=5 // pred_check
        %p619 = pneg %p618
      $region58: #{tpu_custom_call.1} parent=5 // pred_check_branch
        %621 = sbr.rel (%p619) target = $region60
      $region59: #{tpu_custom_call.1} parent=5 // pred_region
        %s622 = ssub.s32 %s22, 2
        // Predicated region
        $region61: #{tpu_custom_call.1} parent=59 // pred_check
          %p623 = pneg %p219
        $region62: #{tpu_custom_call.1} parent=59 // pred_check_branch
          %625 = sbr.rel (%p623) target = $region64
        $region63: #{tpu_custom_call.1} parent=59 // pred_region
          %s626 = sand.u32 %s204, 1
          %s627 = scalar_lea.sflag [#allocation5], %s626
          %s628 = sand.u32 %s204, 1
          %s629 = smul.addr %s628, 4
          %s630 = scalar_lea.vmem [#allocation8], %s629
          %631 = dma.done %s627, 64
        $region64: #{tpu_custom_call.1} parent=59 // pred_fallthru
          _
      $region60: #{tpu_custom_call.1} parent=5 // pred_fallthru
        _
    $region6: #{tpu_custom_call.1} parent=1 // loop_footer
      %s26 = sadd.s32 1, %s22
    $region7: #{tpu_custom_call.1} parent=1 // loop_footer_branch
      %21 = sbr.rel target = $region3
    $region8: #{tpu_custom_call.1} parent=1 // loop_exit
      _
    %632 = vsyncpa [#allocation4], 1
    %s633 = scalar_lea.sflag [#allocation4], 1
    %634 = vsyncpa %s633, 1
    %635 = vsyncpa [#allocation7], 1
    %s636 = scalar_lea.sflag [#allocation7], 1
    %637 = vsyncpa %s636, 1
    %638 = vsyncpa [#allocation5], 1
    %s639 = scalar_lea.sflag [#allocation5], 1
    %640 = vsyncpa %s639, 1

</llo_original>
